<compile_context>
chip_gen: v7x
topology: tpu7x:2x2x1
jax: 0.10.0
libtpu: 0.0.40
codegen_flags: <defaults>
</compile_context>

<pallas_src>
import functools

import numpy as np
import jax
import jax.numpy as jnp
from jax import lax
from jax.experimental import pallas as pl
from jax.experimental.pallas import tpu as pltpu

_SUBLANE = 8  # f32 sublane tile


def _round_up(x, m):
    return ((x + m - 1) // m) * m


# ----------------------------------------------------------------------------
# Pallas kernel: 3-layer MLP, MXU matmuls with f32 accumulation, EUP tanh.
# ----------------------------------------------------------------------------
def critic_kernel(obs_ref, act_ref,
                  w1o_ref, w1a_ref, b1_ref,
                  w2_ref, b2_ref,
                  w3t_ref, b3t_ref,
                  out_ref, *, bf16_tanh):
    # Inputs arrive f32; cast to bf16 here (no wrapper-side cast pass).
    obs = obs_ref[...].astype(jnp.bfloat16)
    act = act_ref[...].astype(jnp.bfloat16)

    # Layer 1: team-count reduction is folded into w1a (done in prepare_params),
    # so both terms are plain MXU matmuls.
    pre1 = (jnp.dot(obs, w1o_ref[...], preferred_element_type=jnp.float32)
            + jnp.dot(act, w1a_ref[...], preferred_element_type=jnp.float32)
            + b1_ref[...])
    if bf16_tanh:
        h1 = jnp.tanh(pre1.astype(jnp.bfloat16))
    else:
        h1 = jnp.tanh(pre1).astype(jnp.bfloat16)

    # Layer 2.
    pre2 = (jnp.dot(h1, w2_ref[...], preferred_element_type=jnp.float32)
            + b2_ref[...])
    if bf16_tanh:
        h2 = jnp.tanh(pre2.astype(jnp.bfloat16))
    else:
        h2 = jnp.tanh(pre2).astype(jnp.bfloat16)

    # Value head, emitted transposed: (Vp, H) x (TB, H)^T -> (Vp, TB).
    # Lane-dense along the batch, only Vp=8 sublane rows of writeback.
    out_t = lax.dot_general(w3t_ref[...], h2,
                            dimension_numbers=(((1,), (1,)), ((), ())),
                            preferred_element_type=jnp.float32)
    out_ref[...] = out_t + b3t_ref[...]


# ----------------------------------------------------------------------------
# One-time parameter preparation (cache per parameter update in an RL loop).
# ----------------------------------------------------------------------------
def prepare_params(params, action_dim):
    H = params["w2"].shape[0]
    value_dim = params["w3"].shape[1]
    half = action_dim // 2

    # Fold the team-count reduction into the first-layer action weights:
    # W1a' = M @ W1_act with M the fixed (action_dim, 2) 0/1 team matrix.
    team = jnp.zeros((action_dim, 2), jnp.float32)
    team = team.at[:half, 0].set(1.0).at[half:, 1].set(1.0)
    w1a_folded = team @ params["w1_act"]                     # (action_dim, H)

    # Value head stored transposed and sublane-padded to 8 rows so the kernel
    # writes an unmasked lane-dense (8, TB) f32 block.
    v_pad = _round_up(value_dim, _SUBLANE)
    w3_t = jnp.zeros((v_pad, H), jnp.float32).at[:value_dim, :].set(params["w3"].T)
    b3_t = jnp.zeros((v_pad, 1), jnp.float32).at[:value_dim, 0].set(params["b3"][0])

    return {
        "value_dim": value_dim,
        "w1_obs": params["w1_obs"].astype(jnp.bfloat16),     # (input_dim, H)
        "w1_act": w1a_folded.astype(jnp.bfloat16),           # (action_dim, H)
        "b1": params["b1"],                                  # (1, H) f32
        "w2": params["w2"].astype(jnp.bfloat16),             # (H, H)
        "b2": params["b2"],                                  # (1, H) f32
        "w3_t": w3_t.astype(jnp.bfloat16),                   # (v_pad, H)
        "b3_t": b3_t,                                        # (v_pad, 1) f32
    }


# ----------------------------------------------------------------------------
# Forward wrapper: batch tiling, padding, pallas_call.
# ----------------------------------------------------------------------------
def centralised_critic_forward(observation, action, prepared, *,
                               batch_tile=4096, bf16_tanh=False):
    # 1-D (unbatched) path of the PyTorch module: add a batch dim, squeeze out.
    squeeze_out = observation.ndim == 1
    if squeeze_out:
        observation = observation[None, :]
    if action.ndim == 1:
        action = action[None, :]

    B, input_dim = observation.shape
    _, action_dim = action.shape
    H = prepared["w2"].shape[0]
    value_dim = prepared["value_dim"]
    v_pad = prepared["w3_t"].shape[0]

    # Big batch tile to amortize ~0.35 us/grid-step + MXU weight pushes, but
    # keep >= 2 grid steps when the batch allows so the "parallel" axis can
    # shard across both v7x TensorCores.  16-aligned for bf16 sublane packing.
    if B > 2 * 16:
        TB = min(batch_tile, _round_up(pl.cdiv(B, 2), 16))
    else:
        TB = _round_up(max(B, 1), 16)
    n_tiles = pl.cdiv(B, TB)
    B_pad = n_tiles * TB
    if B_pad != B:
        pad = B_pad - B
        observation = jnp.pad(observation, ((0, pad), (0, 0)))
        action = jnp.pad(action, ((0, pad), (0, 0)))

    flops = 2 * B_pad * ((input_dim + action_dim) * H + H * H + H * v_pad)
    transcendentals = 2 * B_pad * H
    bytes_accessed = (
        4 * B_pad * (input_dim + action_dim)                      # f32 inputs
        + 2 * ((input_dim + action_dim) * H + H * H + H * v_pad)  # bf16 weights
        + 4 * (2 * H + v_pad)                                     # f32 biases
        + 4 * B_pad * v_pad)                                      # f32 output (transposed)

    kernel = functools.partial(critic_kernel, bf16_tanh=bf16_tanh)

    out_t = pl.pallas_call(
        kernel,
        out_shape=jax.ShapeDtypeStruct((v_pad, B_pad), jnp.float32),
        grid=(n_tiles,),
        in_specs=[
            pl.BlockSpec((TB, input_dim), lambda i: (i, 0)),   # observation (f32)
            pl.BlockSpec((TB, action_dim), lambda i: (i, 0)),  # action (f32)
            pl.BlockSpec((input_dim, H), lambda i: (0, 0)),    # W1 obs part (bf16)
            pl.BlockSpec((action_dim, H), lambda i: (0, 0)),   # W1 act part, folded (bf16)
            pl.BlockSpec((1, H), lambda i: (0, 0)),            # b1 (f32)
            pl.BlockSpec((H, H), lambda i: (0, 0)),            # W2 (bf16)
            pl.BlockSpec((1, H), lambda i: (0, 0)),            # b2 (f32)
            pl.BlockSpec((v_pad, H), lambda i: (0, 0)),        # W3^T (bf16, sublane-padded)
            pl.BlockSpec((v_pad, 1), lambda i: (0, 0)),        # b3^T (f32)
        ],
        out_specs=pl.BlockSpec((v_pad, TB), lambda i: (0, i)),
        compiler_params=pltpu.CompilerParams(
            dimension_semantics=("parallel",)),
        cost_estimate=pl.CostEstimate(
            flops=flops,
            transcendentals=transcendentals,
            bytes_accessed=bytes_accessed),
    )(observation, action,
      prepared["w1_obs"], prepared["w1_act"], prepared["b1"],
      prepared["w2"], prepared["b2"], prepared["w3_t"], prepared["b3_t"])

    out = out_t[:value_dim, :B].T                    # (B, value_dim)
    return out[0] if squeeze_out else out


# ----------------------------------------------------------------------------
# Deterministic parameter init (orthogonal weights, gain=sqrt(2); zero biases)
# ----------------------------------------------------------------------------
def orthogonal(key, out_dim, in_dim, gain):
    rows, cols = out_dim, in_dim
    flat = jax.random.normal(key, (max(rows, cols), min(rows, cols)), jnp.float32)
    q, r = jnp.linalg.qr(flat)
    q = q * jnp.sign(jnp.diag(r))
    if rows < cols:
        q = q.T
    w_torch = gain * q[:rows, :cols]            # (out, in), PyTorch layout
    return jnp.asarray(w_torch.T, jnp.float32)  # (in, out), kernel layout


def make_params(input_dim, hidden_dim, value_dim, key):
    gain = float(np.sqrt(2.0))  # calculate_gain('relu')
    k1, k2, k3 = jax.random.split(key, 3)
    w1 = orthogonal(k1, hidden_dim, input_dim + 2, gain)     # (input_dim+2, H)
    return {
        "w1_obs": w1[:input_dim, :],                         # (input_dim, H)
        "w1_act": w1[input_dim:, :],                         # (2, H)
        "b1": jnp.zeros((1, hidden_dim), jnp.float32),
        "w2": orthogonal(k2, hidden_dim, hidden_dim, gain),  # (H, H)
        "b2": jnp.zeros((1, hidden_dim), jnp.float32),
        "w3": orthogonal(k3, value_dim, hidden_dim, gain),   # (H, value_dim)
        "b3": jnp.zeros((1, value_dim), jnp.float32),
    }


# ----------------------------------------------------------------------------
# Reference (plain JAX, same bf16 quantization as the kernel) for sanity check
# ----------------------------------------------------------------------------
def reference_forward(observation, action, params, action_dim):
    half = action_dim // 2
    t1 = jnp.sum(action[:, :half], axis=1, keepdims=True)
    t2 = jnp.sum(action[:, half:], axis=1, keepdims=True)
    feat = jnp.concatenate([observation, t1, t2], axis=1).astype(jnp.bfloat16)
    w1 = jnp.concatenate([params["w1_obs"], params["w1_act"]],
                         axis=0).astype(jnp.bfloat16)
    h1 = jnp.tanh(jnp.dot(feat, w1, preferred_element_type=jnp.float32)
                  + params["b1"])
    h2 = jnp.tanh(jnp.dot(h1.astype(jnp.bfloat16),
                          params["w2"].astype(jnp.bfloat16),
                          preferred_element_type=jnp.float32)
                  + params["b2"])
    return (jnp.dot(h2.astype(jnp.bfloat16),
                    params["w3"].astype(jnp.bfloat16),
                    preferred_element_type=jnp.float32)
            + params["b3"])


if __name__ == "__main__":
    B, INPUT_DIM, ACTION_DIM, HIDDEN_DIM, VALUE_DIM = 8, 16, 8, 128, 2

    key = jax.random.PRNGKey(0)
    k_obs, k_act, k_par = jax.random.split(key, 3)

    observation = jax.random.normal(k_obs, (B, INPUT_DIM), jnp.float32)
    # binary-ish action indicators, like the intended usage
    action = (jax.random.uniform(k_act, (B, ACTION_DIM)) > 0.5).astype(jnp.float32)

    params = make_params(INPUT_DIM, HIDDEN_DIM, VALUE_DIM, k_par)
    prepared = prepare_params(params, ACTION_DIM)   # one-time per param update

    out = centralised_critic_forward(observation, action, prepared)
    out = jax.block_until_ready(out)

    ref = reference_forward(observation, action, params, ACTION_DIM)
    np.testing.assert_allclose(np.asarray(out), np.asarray(ref),
                               rtol=1e-2, atol=1e-2)

    print("KERNEL_OK")
</pallas_src>

<mosaic_0001>
module attributes {stable_mosaic.version = 11 : i64} {
  func.func @critic_kernel(%arg0: i32, %arg1: memref<16x16xf32, #tpu.memory_space<vmem>>, %arg2: memref<16x8xf32, #tpu.memory_space<vmem>>, %arg3: memref<16x128xbf16, #tpu.memory_space<vmem>>, %arg4: memref<8x128xbf16, #tpu.memory_space<vmem>>, %arg5: memref<1x128xf32, #tpu.memory_space<vmem>>, %arg6: memref<128x128xbf16, #tpu.memory_space<vmem>>, %arg7: memref<1x128xf32, #tpu.memory_space<vmem>>, %arg8: memref<8x128xbf16, #tpu.memory_space<vmem>>, %arg9: memref<8x1xf32, #tpu.memory_space<vmem>>, %arg10: memref<8x16xf32, #tpu.memory_space<vmem>>) attributes {dimension_semantics = [#tpu.dimension_semantics<parallel>], iteration_bounds = array<i64: 1>, scalar_prefetch = 0 : i64, scratch_operands = 0 : i64, tpu.core_type = #tpu.core_type<tc>, window_params = [{transform_indices = @transform_0, window_bounds = array<i64: 16, 16>}, {transform_indices = @transform_1, window_bounds = array<i64: 16, 8>}, {pipeline_mode = #tpu.pipeline_mode<synchronous>, transform_indices = @transform_2, window_bounds = array<i64: 16, 128>}, {pipeline_mode = #tpu.pipeline_mode<synchronous>, transform_indices = @transform_3, window_bounds = array<i64: 8, 128>}, {pipeline_mode = #tpu.pipeline_mode<synchronous>, transform_indices = @transform_4, window_bounds = array<i64: 1, 128>}, {pipeline_mode = #tpu.pipeline_mode<synchronous>, transform_indices = @transform_5, window_bounds = array<i64: 128, 128>}, {pipeline_mode = #tpu.pipeline_mode<synchronous>, transform_indices = @transform_6, window_bounds = array<i64: 1, 128>}, {pipeline_mode = #tpu.pipeline_mode<synchronous>, transform_indices = @transform_7, window_bounds = array<i64: 8, 128>}, {pipeline_mode = #tpu.pipeline_mode<synchronous>, transform_indices = @transform_8, window_bounds = array<i64: 8, 1>}, {transform_indices = @transform_9, window_bounds = array<i64: 8, 16>}]} {
    %c0 = arith.constant 0 : index
    %c0_0 = arith.constant 0 : index
    %0 = vector.load %arg1[%c0, %c0_0] : memref<16x16xf32, #tpu.memory_space<vmem>>, vector<16x16xf32>
    %1 = arith.truncf %0 : vector<16x16xf32> to vector<16x16xbf16>
    %c0_1 = arith.constant 0 : index
    %c0_2 = arith.constant 0 : index
    %2 = vector.load %arg2[%c0_1, %c0_2] : memref<16x8xf32, #tpu.memory_space<vmem>>, vector<16x8xf32>
    %3 = arith.truncf %2 : vector<16x8xf32> to vector<16x8xbf16>
    %c0_3 = arith.constant 0 : index
    %c0_4 = arith.constant 0 : index
    %4 = vector.load %arg3[%c0_3, %c0_4] : memref<16x128xbf16, #tpu.memory_space<vmem>>, vector<16x128xbf16>
    %cst = arith.constant dense<0.000000e+00> : vector<16x128xf32>
    %5 = tpu.matmul %1, %4, %cst {dimension_numbers = #tpu.dot_dimension_numbers<[1], [0], [0], [1], [0, 0, 1, 1], [], []>} : vector<16x16xbf16>, vector<16x128xbf16>, vector<16x128xf32> -> vector<16x128xf32>
    %c0_5 = arith.constant 0 : index
    %c0_6 = arith.constant 0 : index
    %6 = vector.load %arg4[%c0_5, %c0_6] : memref<8x128xbf16, #tpu.memory_space<vmem>>, vector<8x128xbf16>
    %cst_7 = arith.constant dense<0.000000e+00> : vector<16x128xf32>
    %7 = tpu.matmul %3, %6, %cst_7 {dimension_numbers = #tpu.dot_dimension_numbers<[1], [0], [0], [1], [0, 0, 1, 1], [], []>} : vector<16x8xbf16>, vector<8x128xbf16>, vector<16x128xf32> -> vector<16x128xf32>
    %8 = arith.addf %5, %7 : vector<16x128xf32>
    %c0_8 = arith.constant 0 : index
    %c0_9 = arith.constant 0 : index
    %9 = vector.load %arg5[%c0_8, %c0_9] : memref<1x128xf32, #tpu.memory_space<vmem>>, vector<1x128xf32>
    %10 = vector.broadcast %9 : vector<1x128xf32> to vector<16x128xf32>
    %11 = arith.addf %8, %10 : vector<16x128xf32>
    %12 = math.tanh %11 : vector<16x128xf32>
    %13 = arith.truncf %12 : vector<16x128xf32> to vector<16x128xbf16>
    %c0_10 = arith.constant 0 : index
    %c0_11 = arith.constant 0 : index
    %14 = vector.load %arg6[%c0_10, %c0_11] : memref<128x128xbf16, #tpu.memory_space<vmem>>, vector<128x128xbf16>
    %cst_12 = arith.constant dense<0.000000e+00> : vector<16x128xf32>
    %15 = tpu.matmul %13, %14, %cst_12 {dimension_numbers = #tpu.dot_dimension_numbers<[1], [0], [0], [1], [0, 0, 1, 1], [], []>} : vector<16x128xbf16>, vector<128x128xbf16>, vector<16x128xf32> -> vector<16x128xf32>
    %c0_13 = arith.constant 0 : index
    %c0_14 = arith.constant 0 : index
    %16 = vector.load %arg7[%c0_13, %c0_14] : memref<1x128xf32, #tpu.memory_space<vmem>>, vector<1x128xf32>
    %17 = vector.broadcast %16 : vector<1x128xf32> to vector<16x128xf32>
    %18 = arith.addf %15, %17 : vector<16x128xf32>
    %19 = math.tanh %18 : vector<16x128xf32>
    %20 = arith.truncf %19 : vector<16x128xf32> to vector<16x128xbf16>
    %c0_15 = arith.constant 0 : index
    %c0_16 = arith.constant 0 : index
    %21 = vector.load %arg8[%c0_15, %c0_16] : memref<8x128xbf16, #tpu.memory_space<vmem>>, vector<8x128xbf16>
    %cst_17 = arith.constant dense<0.000000e+00> : vector<8x16xf32>
    %22 = tpu.matmul %21, %20, %cst_17 {dimension_numbers = #tpu.dot_dimension_numbers<[1], [1], [0], [0], [0, 0, 1, 0], [], []>} : vector<8x128xbf16>, vector<16x128xbf16>, vector<8x16xf32> -> vector<8x16xf32>
    %c0_18 = arith.constant 0 : index
    %c0_19 = arith.constant 0 : index
    %23 = vector.load %arg9[%c0_18, %c0_19] : memref<8x1xf32, #tpu.memory_space<vmem>>, vector<8x1xf32>
    %24 = vector.broadcast %23 : vector<8x1xf32> to vector<8x16xf32>
    %25 = arith.addf %22, %24 : vector<8x16xf32>
    %c0_20 = arith.constant 0 : index
    %c0_21 = arith.constant 0 : index
    %26 = vector.load %arg10[%c0_20, %c0_21] : memref<8x16xf32, #tpu.memory_space<vmem>>, vector<8x16xf32>
    tpu.vector_store %arg10[%c0_20, %c0_21], %25 {strides = array<i32>} : memref<8x16xf32, #tpu.memory_space<vmem>>, vector<8x16xf32>,
    return
  }
  func.func @transform_0(%arg0: i32) -> (i32, i32) {
    %c0_i32 = arith.constant 0 : i32
    %c0_i32_0 = arith.constant 0 : i32
    return %arg0, %c0_i32 : i32, i32
  }
  func.func @transform_1(%arg0: i32) -> (i32, i32) {
    %c0_i32 = arith.constant 0 : i32
    %c0_i32_0 = arith.constant 0 : i32
    return %arg0, %c0_i32 : i32, i32
  }
  func.func @transform_2(%arg0: i32) -> (i32, i32) {
    %c0_i32 = arith.constant 0 : i32
    %c0_i32_0 = arith.constant 0 : i32
    %c0_i32_1 = arith.constant 0 : i32
    return %c0_i32, %c0_i32_0 : i32, i32
  }
  func.func @transform_3(%arg0: i32) -> (i32, i32) {
    %c0_i32 = arith.constant 0 : i32
    %c0_i32_0 = arith.constant 0 : i32
    %c0_i32_1 = arith.constant 0 : i32
    return %c0_i32, %c0_i32_0 : i32, i32
  }
  func.func @transform_4(%arg0: i32) -> (i32, i32) {
    %c0_i32 = arith.constant 0 : i32
    %c0_i32_0 = arith.constant 0 : i32
    %c0_i32_1 = arith.constant 0 : i32
    return %c0_i32, %c0_i32_0 : i32, i32
  }
  func.func @transform_5(%arg0: i32) -> (i32, i32) {
    %c0_i32 = arith.constant 0 : i32
    %c0_i32_0 = arith.constant 0 : i32
    %c0_i32_1 = arith.constant 0 : i32
    return %c0_i32, %c0_i32_0 : i32, i32
  }
  func.func @transform_6(%arg0: i32) -> (i32, i32) {
    %c0_i32 = arith.constant 0 : i32
    %c0_i32_0 = arith.constant 0 : i32
    %c0_i32_1 = arith.constant 0 : i32
    return %c0_i32, %c0_i32_0 : i32, i32
  }
  func.func @transform_7(%arg0: i32) -> (i32, i32) {
    %c0_i32 = arith.constant 0 : i32
    %c0_i32_0 = arith.constant 0 : i32
    %c0_i32_1 = arith.constant 0 : i32
    return %c0_i32, %c0_i32_0 : i32, i32
  }
  func.func @transform_8(%arg0: i32) -> (i32, i32) {
    %c0_i32 = arith.constant 0 : i32
    %c0_i32_0 = arith.constant 0 : i32
    %c0_i32_1 = arith.constant 0 : i32
    return %c0_i32, %c0_i32_0 : i32, i32
  }
  func.func @transform_9(%arg0: i32) -> (i32, i32) {
    %c0_i32 = arith.constant 0 : i32
    %c0_i32_0 = arith.constant 0 : i32
    return %c0_i32, %arg0 : i32, i32
  }
}

</mosaic_0001>

<llo_original>
// kernel: tpu_custom_call.1
$region0: #{tpu_custom_call.1}
  #allocation0 [shape = 'u32[]', space=smem, size = 0x4, offset = 0x4, fixed_abs, tag = 'smem constant byte address 0x4 - core index']
  #allocation1 [shape = 'u32[144,128]{1,0:T(1,128)}', space=vmem, size = 0x12000, scoped, tag = 'internal scratch']
  %s0 = inlined_call_operand.vmem [shape: f32[16,16], index: 0, kind: input, shape index: {}]
  %s1 = inlined_call_operand.vmem [shape: f32[16,8], index: 1, kind: input, shape index: {}]
  %s2 = inlined_call_operand.vmem [shape: bf16[16,128], index: 2, kind: input, shape index: {}]
  %s3 = inlined_call_operand.vmem [shape: bf16[8,128], index: 3, kind: input, shape index: {}]
  %s4 = inlined_call_operand.vmem [shape: f32[1,128], index: 4, kind: input, shape index: {}]
  %s5 = inlined_call_operand.hbm [shape: bf16[128,128], index: 5, kind: input, shape index: {}]
  %s6 = inlined_call_operand.vmem [shape: f32[1,128], index: 6, kind: input, shape index: {}]
  %s7 = inlined_call_operand.vmem [shape: bf16[8,128], index: 7, kind: input, shape index: {}]
  %s8 = inlined_call_operand.vmem [shape: f32[8,1], index: 8, kind: input, shape index: {}]
  %s9 = inlined_call_operand.hbm [shape: f32[8,16], index: 9, kind: output, shape index: {}]
  %s10 = sld [smem:[#allocation0]]
  $region50: #{tpu_custom_call.1} parent=0
    _
  %s12 = ssub.s32 1, %s10
  %s13 = scalar_select 0, %s12, %s10
  $region1: #{tpu_custom_call.1} parent=0
    #allocation2 [shape = 'u8[32768]{0}', space=vmem, size = 0x8000, scoped, tag = 'input window, operand 5, single buffered']
    #allocation3 [shape = 's32[1]{0}', space=sflag, size = 0x4, scoped, tag = 'scoped memory for tpu_custom_call.1']
    #allocation4 [shape = 's32[1]{0}', space=sflag, size = 0x4, scoped, tag = 'scoped memory for tpu_custom_call.1']
    #allocation5 [shape = 'u8[4096]{0}', space=vmem, size = 0x1000, scoped, tag = 'output window, operand 0, single buffered']
    %14 = vsyncpa [#allocation3], 0
    %15 = vsyncpa [#allocation4], 0
    // Predicated region
    $region2: #{tpu_custom_call.1} parent=1 // pred_check
      _
    $region3: #{tpu_custom_call.1} parent=1 // pred_check_branch
      %17 = sbr.rel (0) target = $region5
    $region4: #{tpu_custom_call.1} parent=1 // pred_region
      _
    $region5: #{tpu_custom_call.1} parent=1 // pred_fallthru
      _
    // Predicated region
    $region6: #{tpu_custom_call.1} parent=1 // pred_check
      _
    $region7: #{tpu_custom_call.1} parent=1 // pred_check_branch
      %19 = sbr.rel (0) target = $region9
    $region8: #{tpu_custom_call.1} parent=1 // pred_region
      _
    $region9: #{tpu_custom_call.1} parent=1 // pred_fallthru
      _
    // Predicated region
    $region10: #{tpu_custom_call.1} parent=1 // pred_check
      _
    $region11: #{tpu_custom_call.1} parent=1 // pred_check_branch
      %21 = sbr.rel (0) target = $region13
    $region12: #{tpu_custom_call.1} parent=1 // pred_region
      _
    $region13: #{tpu_custom_call.1} parent=1 // pred_fallthru
      _
    // Predicated region
    $region14: #{tpu_custom_call.1} parent=1 // pred_check
      _
    $region15: #{tpu_custom_call.1} parent=1 // pred_check_branch
      %23 = sbr.rel (0) target = $region17
    $region16: #{tpu_custom_call.1} parent=1 // pred_region
      _
    $region17: #{tpu_custom_call.1} parent=1 // pred_fallthru
      _
    // Predicated region
    $region18: #{tpu_custom_call.1} parent=1 // pred_check
      _
    $region19: #{tpu_custom_call.1} parent=1 // pred_check_branch
      %25 = sbr.rel (0) target = $region21
    $region20: #{tpu_custom_call.1} parent=1 // pred_region
      _
    $region21: #{tpu_custom_call.1} parent=1 // pred_fallthru
      _
    // Predicated region
    $region22: #{tpu_custom_call.1} parent=1 // pred_check
      _
    $region23: #{tpu_custom_call.1} parent=1 // pred_check_branch
      %27 = sbr.rel (0) target = $region25
    $region24: #{tpu_custom_call.1} parent=1 // pred_region
      %s29 = ssub.s32 1024, 1024
      %30 = vsyncadd [#allocation3], %s29
      %s31 = sshll.u32 [#allocation2], 4
      %s32 = int_to_ptr.vmem [resolvable:$true] %s31
      %37 = dma.hbm_to_vmem [thread:$0]  %s5, 1024, %s32, [#allocation3], 64, 64, 4
    $region25: #{tpu_custom_call.1} parent=1 // pred_fallthru
      _
    // Predicated region
    $region26: #{tpu_custom_call.1} parent=1 // pred_check
      _
    $region27: #{tpu_custom_call.1} parent=1 // pred_check_branch
      %39 = sbr.rel (0) target = $region29
    $region28: #{tpu_custom_call.1} parent=1 // pred_region
      _
    $region29: #{tpu_custom_call.1} parent=1 // pred_fallthru
      _
    // Predicated region
    $region30: #{tpu_custom_call.1} parent=1 // pred_check
      _
    $region31: #{tpu_custom_call.1} parent=1 // pred_check_branch
      %41 = sbr.rel (0) target = $region33
    $region32: #{tpu_custom_call.1} parent=1 // pred_region
      _
    $region33: #{tpu_custom_call.1} parent=1 // pred_fallthru
      _
    // Predicated region
    $region34: #{tpu_custom_call.1} parent=1 // pred_check
      _
    $region35: #{tpu_custom_call.1} parent=1 // pred_check_branch
      %43 = sbr.rel (0) target = $region37
    $region36: #{tpu_custom_call.1} parent=1 // pred_region
      _
    $region37: #{tpu_custom_call.1} parent=1 // pred_fallthru
      _
    // Predicated region
    $region38: #{tpu_custom_call.1} parent=1 // pred_check
      _
    $region39: #{tpu_custom_call.1} parent=1 // pred_check_branch
      %45 = sbr.rel (0) target = $region41
    $region40: #{tpu_custom_call.1} parent=1 // pred_region
      %46 = dma.done [#allocation3], 1024
    $region41: #{tpu_custom_call.1} parent=1 // pred_fallthru
      _
    %v48 = vld [vmem:[%s0] sm:$0xff]
    %v49 = vld [vmem:[%s0 + $0x8] sm:$0xff]
    %v50 = vpack.c.bf16 %v49, %v48
    %v51 = vld [vmem:[%s1] sm:$0xff]
    %v52 = vld [vmem:[%s1 + $0x8] sm:$0xff]
    %v53 = vpack.c.bf16 %v52, %v51
    %v54 = vld [vmem:[%s2] sm:$0xf]
    %v55 = vld [vmem:[%s2 + $0x4] sm:$0xf]
    %v56 = vld [vmem:[%s3] sm:$0xf]
    %vm57 = vcmask 64512
    %v59 = vsel %vm57, %v53, 0
    %vm61 = vcmask 1043456
    %v63 = vsel %vm61, %v56, 0
    %65 = vmatprep.subr.bf16.mxu0 0
    %66 = vmatpush1.bf16.msra.mxu0 %v63
    %67 = vmatprep.subr.bf16.mxu0 0
    %68 = vmatpush1.bf16.msra.mxu0 0
    %69 = vmatprep.subr.bf16.mxu0 0
    %70 = vmatpush1.bf16.msra.mxu0 0
    %71 = vmatprep.subr.bf16.mxu0 0
    %72 = vmatpush1.bf16.msra.mxu0 0
    %73 = vmatprep.subr.bf16.mxu0 0
    %74 = vmatpush1.bf16.msra.mxu0 0
    %75 = vmatprep.subr.bf16.mxu0 0
    %76 = vmatpush1.bf16.msra.mxu0 0
    %77 = vmatprep.subr.bf16.mxu0 0
    %78 = vmatpush1.bf16.msra.mxu0 0
    %79 = vmatprep.subr.bf16.mxu0 0
    %80 = vmatpush1.bf16.msra.mxu0 0
    %81 = vmatprep.subr.bf16.mxu0 0
    %82 = vmatpush1.bf16.msra.mxu0 0
    %83 = vmatprep.subr.bf16.mxu0 0
    %84 = vmatpush1.bf16.msra.mxu0 0
    %85 = vmatprep.subr.bf16.mxu0 0
    %86 = vmatpush1.bf16.msra.mxu0 0
    %87 = vmatprep.subr.bf16.mxu0 0
    %88 = vmatpush1.bf16.msra.mxu0 0
    %89 = vmatprep.subr.bf16.mxu0 0
    %90 = vmatpush1.bf16.msra.mxu0 0
    %91 = vmatprep.subr.bf16.mxu0 0
    %92 = vmatpush1.bf16.msra.mxu0 0
    %93 = vmatprep.subr.bf16.mxu0 0
    %94 = vmatpush1.bf16.msra.mxu0 0
    %95 = vmatprep.subr.bf16.mxu0 0
    %96 = vmatpush1.bf16.msra.mxu0 0
    %97 = vmatprep.mubr.bf16.mxu0 0
    %98 = vmatmul.mubr.bf16.gmra.mrb[0].mxu0 %v59
    %v99 = vpop.f32.mrb[0].mxu0
    %v100 = vadd.f32 0.0, %v99
    %v101 = vpop.f32.mrb[0].mxu0
    %v102 = vpop.f32.mrb[0].mxu0
    %v103 = vadd.f32 0.0, %v102
    %v104 = vpop.f32.mrb[0].mxu0
    %105 = vdwg.mxu0
    %v108 = vunpack.c.l.b16 %v54
    %v109 = vunpack.c.l.b16 %v55
    %v110 = vpack.c.b16 %v109, %v108
    %vm112 = vcmask 130048
    %v114 = vsel %vm112, %v50, 0
    %116 = vmatprep.subr.bf16.mxu0 0
    %117 = vmatpush1.bf16.msra.mxu0 %v110
    %118 = vmatprep.subr.bf16.mxu0 0
    %119 = vmatpush1.bf16.msra.mxu0 0
    %120 = vmatprep.subr.bf16.mxu0 0
    %121 = vmatpush1.bf16.msra.mxu0 0
    %122 = vmatprep.subr.bf16.mxu0 0
    %123 = vmatpush1.bf16.msra.mxu0 0
    %124 = vmatprep.subr.bf16.mxu0 0
    %125 = vmatpush1.bf16.msra.mxu0 0
    %126 = vmatprep.subr.bf16.mxu0 0
    %127 = vmatpush1.bf16.msra.mxu0 0
    %128 = vmatprep.subr.bf16.mxu0 0
    %129 = vmatpush1.bf16.msra.mxu0 0
    %130 = vmatprep.subr.bf16.mxu0 0
    %131 = vmatpush1.bf16.msra.mxu0 0
    %132 = vmatprep.subr.bf16.mxu0 0
    %133 = vmatpush1.bf16.msra.mxu0 0
    %134 = vmatprep.subr.bf16.mxu0 0
    %135 = vmatpush1.bf16.msra.mxu0 0
    %136 = vmatprep.subr.bf16.mxu0 0
    %137 = vmatpush1.bf16.msra.mxu0 0
    %138 = vmatprep.subr.bf16.mxu0 0
    %139 = vmatpush1.bf16.msra.mxu0 0
    %140 = vmatprep.subr.bf16.mxu0 0
    %141 = vmatpush1.bf16.msra.mxu0 0
    %142 = vmatprep.subr.bf16.mxu0 0
    %143 = vmatpush1.bf16.msra.mxu0 0
    %144 = vmatprep.subr.bf16.mxu0 0
    %145 = vmatpush1.bf16.msra.mxu0 0
    %146 = vmatprep.subr.bf16.mxu0 0
    %147 = vmatpush1.bf16.msra.mxu0 0
    %148 = vmatprep.mubr.bf16.mxu0 0
    %149 = vmatmul.mubr.bf16.gmra.mrb[0].mxu0 %v114
    %v150 = vpop.f32.mrb[0].mxu0
    %v151 = vadd.f32 %v100, %v150
    %v152 = vpop.f32.mrb[0].mxu0
    %v153 = vpop.f32.mrb[0].mxu0
    %v154 = vadd.f32 %v103, %v153
    %v155 = vpop.f32.mrb[0].mxu0
    %156 = vdwg.mxu0
    %v157 = vld [vmem:[%s4] sm:$0x1]
    %v159 = vlaneseq
    %v160 = vshrl.u32 %v159, 7
    %v161 = vsub.s32 0, %v160
    %v162 = vrot.slane %v157, %v161
    %v164 = vadd.f32 %v151, %v162
    %v165 = vadd.f32 %v154, %v162
    %v166 = vtanh.pop %v164
    %v167 = vtanh.pop %v165
    %v168 = vpack.c.bf16 %v167, %v166
    %v169 = vld [vmem:[#allocation2] sm:$0xf]
    %v170 = vld [vmem:[#allocation2 + $0x4] sm:$0xf]
    %v171 = vld [vmem:[#allocation2 + $0x8] sm:$0xf]
    %v172 = vld [vmem:[#allocation2 + $0xc] sm:$0xf]
    %v173 = vld [vmem:[#allocation2 + $0x10] sm:$0xf]
    %v174 = vld [vmem:[#allocation2 + $0x14] sm:$0xf]
    %v175 = vld [vmem:[#allocation2 + $0x18] sm:$0xf]
    %v176 = vld [vmem:[#allocation2 + $0x1c] sm:$0xf]
    %v177 = vld [vmem:[#allocation2 + $0x20] sm:$0xf]
    %v178 = vld [vmem:[#allocation2 + $0x24] sm:$0xf]
    %v179 = vld [vmem:[#allocation2 + $0x28] sm:$0xf]
    %v180 = vld [vmem:[#allocation2 + $0x2c] sm:$0xf]
    %v181 = vld [vmem:[#allocation2 + $0x30] sm:$0xf]
    %v182 = vld [vmem:[#allocation2 + $0x34] sm:$0xf]
    %v183 = vld [vmem:[#allocation2 + $0x38] sm:$0xf]
    %v184 = vld [vmem:[#allocation2 + $0x3c] sm:$0xf]
    %v185 = vld [vmem:[%s6] sm:$0x1]
    %v187 = vlaneseq
    %v188 = vshrl.u32 %v187, 7
    %v189 = vsub.s32 0, %v188
    %v190 = vrot.slane %v185, %v189
    %v208 = vunpack.c.l.b16 %v169
    %v209 = vunpack.c.l.b16 %v170
    %v210 = vunpack.c.l.b16 %v171
    %v211 = vunpack.c.l.b16 %v172
    %v212 = vunpack.c.l.b16 %v173
    %v213 = vunpack.c.l.b16 %v174
    %v214 = vunpack.c.l.b16 %v175
    %v215 = vunpack.c.l.b16 %v176
    %v216 = vunpack.c.l.b16 %v177
    %v217 = vunpack.c.l.b16 %v178
    %v218 = vunpack.c.l.b16 %v179
    %v219 = vunpack.c.l.b16 %v180
    %v220 = vunpack.c.l.b16 %v181
    %v221 = vunpack.c.l.b16 %v182
    %v222 = vunpack.c.l.b16 %v183
    %v223 = vunpack.c.l.b16 %v184
    %v224 = vpack.c.b16 %v209, %v208
    %v225 = vpack.c.b16 %v211, %v210
    %v226 = vpack.c.b16 %v213, %v212
    %v227 = vpack.c.b16 %v215, %v214
    %v228 = vpack.c.b16 %v217, %v216
    %v229 = vpack.c.b16 %v219, %v218
    %v230 = vpack.c.b16 %v221, %v220
    %v231 = vpack.c.b16 %v223, %v222
    %240 = vmatprep.subr.bf16.mxu0 0
    %241 = vmatpush1.bf16.msra.mxu0 %v224
    %242 = vmatprep.subr.bf16.mxu0 0
    %243 = vmatpush1.bf16.msra.mxu0 %v225
    %244 = vmatprep.subr.bf16.mxu0 0
    %245 = vmatpush1.bf16.msra.mxu0 %v226
    %246 = vmatprep.subr.bf16.mxu0 0
    %247 = vmatpush1.bf16.msra.mxu0 %v227
    %248 = vmatprep.subr.bf16.mxu0 0
    %249 = vmatpush1.bf16.msra.mxu0 %v228
    %250 = vmatprep.subr.bf16.mxu0 0
    %251 = vmatpush1.bf16.msra.mxu0 %v229
    %252 = vmatprep.subr.bf16.mxu0 0
    %253 = vmatpush1.bf16.msra.mxu0 %v230
    %254 = vmatprep.subr.bf16.mxu0 0
    %255 = vmatpush1.bf16.msra.mxu0 %v231
    %256 = vmatprep.subr.bf16.mxu0 0
    %257 = vmatpush1.bf16.msra.mxu0 0
    %258 = vmatprep.subr.bf16.mxu0 0
    %259 = vmatpush1.bf16.msra.mxu0 0
    %260 = vmatprep.subr.bf16.mxu0 0
    %261 = vmatpush1.bf16.msra.mxu0 0
    %262 = vmatprep.subr.bf16.mxu0 0
    %263 = vmatpush1.bf16.msra.mxu0 0
    %264 = vmatprep.subr.bf16.mxu0 0
    %265 = vmatpush1.bf16.msra.mxu0 0
    %266 = vmatprep.subr.bf16.mxu0 0
    %267 = vmatpush1.bf16.msra.mxu0 0
    %268 = vmatprep.subr.bf16.mxu0 0
    %269 = vmatpush1.bf16.msra.mxu0 0
    %270 = vmatprep.subr.bf16.mxu0 0
    %271 = vmatpush1.bf16.msra.mxu0 0
    %272 = vmatprep.mubr.bf16.mxu0 0
    %273 = vmatmul.mubr.bf16.gmra.mrb[0].mxu0 %v168
    %v274 = vpop.f32.mrb[0].mxu0
    %v275 = vadd.f32 %v190, %v274
    %v276 = vpop.f32.mrb[0].mxu0
    %v277 = vpop.f32.mrb[0].mxu0
    %v278 = vadd.f32 %v190, %v277
    %v279 = vpop.f32.mrb[0].mxu0
    %280 = vdwg.mxu0
    %v281 = vtanh.pop %v275
    %v282 = vtanh.pop %v278
    %v283 = vpack.c.bf16 %v282, %v281
    %v284 = vld [vmem:[%s7] sm:$0xf]
    %v285 = vld [vmem:[%s8] sm:$0xff]
    %287 = vset.pattern.permute.xlu0 0
    %288 = vperm.xlu0 %287, %v285
    %v289 = vpop.permute.xlu0 %288
    %291 = vmatprep.subr.bf16.mxu0 0
    %292 = vmatpush1.bf16.xpose.msra.mxu0 %v283
    %293 = vmatprep.subr.bf16.mxu0 0
    %294 = vmatpush1.bf16.xpose.msra.mxu0 0
    %295 = vmatprep.subr.bf16.mxu0 0
    %296 = vmatpush1.bf16.xpose.msra.mxu0 0
    %297 = vmatprep.subr.bf16.mxu0 0
    %298 = vmatpush1.bf16.xpose.msra.mxu0 0
    %299 = vmatprep.subr.bf16.mxu0 0
    %300 = vmatpush1.bf16.xpose.msra.mxu0 0
    %301 = vmatprep.subr.bf16.mxu0 0
    %302 = vmatpush1.bf16.xpose.msra.mxu0 0
    %303 = vmatprep.subr.bf16.mxu0 0
    %304 = vmatpush1.bf16.xpose.msra.mxu0 0
    %305 = vmatprep.subr.bf16.mxu0 0
    %306 = vmatpush1.bf16.xpose.msra.mxu0 0
    %307 = vmatprep.subr.bf16.mxu0 0
    %308 = vmatpush1.bf16.xpose.msra.mxu0 0
    %309 = vmatprep.subr.bf16.mxu0 0
    %310 = vmatpush1.bf16.xpose.msra.mxu0 0
    %311 = vmatprep.subr.bf16.mxu0 0
    %312 = vmatpush1.bf16.xpose.msra.mxu0 0
    %313 = vmatprep.subr.bf16.mxu0 0
    %314 = vmatpush1.bf16.xpose.msra.mxu0 0
    %315 = vmatprep.subr.bf16.mxu0 0
    %316 = vmatpush1.bf16.xpose.msra.mxu0 0
    %317 = vmatprep.subr.bf16.mxu0 0
    %318 = vmatpush1.bf16.xpose.msra.mxu0 0
    %319 = vmatprep.subr.bf16.mxu0 0
    %320 = vmatpush1.bf16.xpose.msra.mxu0 0
    %321 = vmatprep.subr.bf16.mxu0 0
    %322 = vmatpush1.bf16.xpose.msra.mxu0 0
    %323 = vmatprep.mubr.bf16.mxu0 0
    %324 = vmatmul.mubr.bf16.gmra.mrb[0].mxu0 %v284
    %v325 = vpop.f32.mrb[0].mxu0
    %v326 = vadd.f32 %v289, %v325
    %v327 = vpop.f32.mrb[0].mxu0
    %v328 = vpop.f32.mrb[0].mxu0
    %v329 = vpop.f32.mrb[0].mxu0
    %330 = vdwg.mxu0
    %331 = vst.msk [vmem:[#allocation5] sm:$0xff] %vm112, %v326
    // Predicated region
    $region42: #{tpu_custom_call.1} parent=1 // pred_check
      _
    $region43: #{tpu_custom_call.1} parent=1 // pred_check_branch
      %333 = sbr.rel (0) target = $region45
    $region44: #{tpu_custom_call.1} parent=1 // pred_region
      %s335 = ssub.s32 128, 128
      %336 = vsyncadd [#allocation4], %s335
      %s338 = sshll.u32 [#allocation5], 4
      %s339 = int_to_ptr.vmem [resolvable:$true] %s338
      %341 = dma.vmem_to_hbm [thread:$0]  %s339, 128, %s9, [#allocation4]
    $region45: #{tpu_custom_call.1} parent=1 // pred_fallthru
      _
    // Predicated region
    $region46: #{tpu_custom_call.1} parent=1 // pred_check
      _
    $region47: #{tpu_custom_call.1} parent=1 // pred_check_branch
      %343 = sbr.rel (0) target = $region49
    $region48: #{tpu_custom_call.1} parent=1 // pred_region
      %344 = dma.done [#allocation4], 128
    $region49: #{tpu_custom_call.1} parent=1 // pred_fallthru
      _
    %345 = vsyncpa [#allocation3], 1
    %346 = vsyncpa [#allocation4], 1

</llo_original>
